<compile_context>
chip_gen: v6e
topology: v6e:2x2x1
jax: 0.10.0
libtpu: 0.0.40
codegen_flags: <defaults>
</compile_context>

<pallas_src>
import jax
import jax.numpy as jnp
from jax.experimental import pallas as pl
from jax.experimental.pallas import tpu as pltpu

_LANE = 128                 # vreg lane width
_MAX_SLAB_LANES = 8192      # cap on the folded slab's lane width


def _copy_kernel(x_ref, o_ref):
    # Pure-bandwidth op: unmasked vreg copy of a lane-dense tile.
    o_ref[...] = x_ref[...]


def _sublane_granule(dtype) -> int:
    # Native sublane packing: 8 for 4-byte, 16 for 2-byte, 32 for 1-byte dtypes.
    return max(8, 32 // jnp.dtype(dtype).itemsize)


def _vmem_budget_bytes():
    """Per-generation (block_budget_bytes, vmem_limit_bytes).

    ~1/10 of physical VMEM per block, clamped to [2 MiB, 8 MiB]; the scoped
    limit covers double-buffered in + out blocks plus headroom and never
    exceeds half of physical VMEM (v7x: 64 MiB physical -> ~6.4 MiB blocks
    under a 32 MiB limit; v5e/v6e: 128 MiB -> 8 MiB blocks under ~40 MiB).
    """
    phys = None
    try:
        info = pltpu.get_tpu_info()
        phys = getattr(info, "vmem_capacity_bytes", None)
    except Exception:
        phys = None
    if not phys or phys <= 0:
        phys = 64 * 1024 * 1024  # conservative: assume v7x-sized VMEM
    block = min(8 * 1024 * 1024, max(2 * 1024 * 1024, phys // 10))
    vmem_limit = max(16 * 1024 * 1024, min(phys // 2, 4 * block + 8 * 1024 * 1024))
    return block, vmem_limit


def _choose_slab_width(total: int, sub: int):
    """Largest L <= 8192 with L % 128 == 0 and L | total, preferring rows >= sub.

    Returns None when total is not a multiple of 128 (no dense fold exists)."""
    if total % _LANE != 0:
        return None
    best = None
    L = _MAX_SLAB_LANES
    while L >= _LANE:
        if total % L == 0:
            if best is None:
                best = L                    # largest divisor (rows may be < sub)
            if total // L >= sub:
                return L                    # largest divisor that fills sublanes
        L //= 2
    return best


def _pick_tile(dim: int, granule: int, max_tile: int) -> int:
    """Largest legal tile (granule multiple, or the full dim) <= max_tile.

    Prefers an exact divisor of `dim` (within 75% of the budget) so the last
    grid step is not a ragged, masked block."""
    max_tile = max(granule, max_tile)
    if dim <= max_tile:
        return dim                          # full dim: always legal, never ragged
    cap = max(granule, (max_tile // granule) * granule)
    floor = max(granule, (3 * cap) // 4)
    t = cap
    while t >= floor:
        if dim % t == 0:
            return t
        t -= granule
    return cap                              # accept a masked edge block


def pallas_flatten(x: jax.Array, start_dim: int = 1, end_dim: int = -1,
                   materialize: bool = True) -> jax.Array:
    """Replicates torch.nn-style Flatten(start_dim, end_dim) forward."""
    shape = x.shape
    ndim = len(shape)
    if end_dim < 0:
        end_dim += ndim

    start_tup = tuple(shape[:start_dim])
    end_tup = tuple(shape[end_dim + 1:])
    mid = 1
    for d in shape[start_dim:end_dim + 1]:
        mid *= d
    out_shape = start_tup + (mid,) + end_tup

    if not materialize:
        # Flatten of a contiguous row-major array is metadata-only; skip the
        # 2x-bytes HBM round trip entirely when a copy is not required.
        return x.reshape(out_shape)

    total = 1
    for d in shape:
        total *= d
    if total == 0:
        return x.reshape(out_shape)

    itemsize = jnp.dtype(x.dtype).itemsize
    sub = _sublane_granule(x.dtype)
    block_budget, vmem_limit = _vmem_budget_bytes()

    # ---- Choose the 2D slab the kernel copies ------------------------------
    # JAX arrays are contiguous row-major, so ANY reshape preserves element
    # order; the kernel only has to move bytes. Prefer a dense (rows, L) fold
    # (L a multiple of 128 dividing total): full-width blocks are single
    # contiguous HBM runs, all lanes/sublanes are used, stores are unmasked.
    L = _choose_slab_width(total, sub)
    if L is not None:
        rows, cols = total // L, L
        ti = cols                                           # full-width blocks
        rows_budget = max(1, block_budget // (cols * itemsize))
        tb = _pick_tile(rows, sub, rows_budget)
    else:
        # total not a multiple of 128: natural (outer, inner) view; full-inner
        # blocks stay contiguous, ragged lanes are masked by Pallas.
        outer = 1
        for d in start_tup:
            outer *= d
        outer = max(outer, 1)
        inner = total // outer
        rows, cols = outer, inner
        if cols * itemsize <= block_budget:                 # whole rows per block
            ti = cols
            rows_budget = max(1, block_budget // (cols * itemsize))
            tb = _pick_tile(rows, sub, rows_budget)
        else:                                               # one row > budget
            tb = rows if rows <= sub else sub
            ti = _pick_tile(cols, _LANE,
                            max(_LANE, block_budget // (tb * itemsize)))

    # v7x megacore: give large copies at least 2 grid points to shard.
    total_bytes = total * itemsize
    if total_bytes > (1 << 20) and pl.cdiv(rows, tb) * pl.cdiv(cols, ti) < 2:
        if rows >= 2 * sub:
            tb = _pick_tile(rows, sub, max(sub, rows // 2))
        elif cols >= 2 * _LANE:
            ti = _pick_tile(cols, _LANE, max(_LANE, cols // 2))

    grid = (pl.cdiv(rows, tb), pl.cdiv(cols, ti))

    # Metadata-only re-fold for a contiguous array.
    x2 = x.reshape(rows, cols)

    flat2d = pl.pallas_call(
        _copy_kernel,
        out_shape=jax.ShapeDtypeStruct((rows, cols), x.dtype),
        grid_spec=pltpu.PrefetchScalarGridSpec(
            num_scalar_prefetch=0,
            grid=grid,
            in_specs=[pl.BlockSpec((tb, ti), lambda i, j: (i, j))],
            out_specs=pl.BlockSpec((tb, ti), lambda i, j: (i, j)),
        ),
        compiler_params=pltpu.CompilerParams(
            dimension_semantics=("parallel", "parallel"),
            vmem_limit_bytes=vmem_limit,
        ),
        cost_estimate=pl.CostEstimate(
            flops=0,
            transcendentals=0,
            bytes_accessed=2 * total_bytes,
        ),
        input_output_aliases={0: 0},   # output reuses the input slab's HBM buffer
    )(x2)

    # Metadata-only reshape to the exact torch output shape.
    return flat2d.reshape(out_shape)


if __name__ == "__main__":
    key = jax.random.PRNGKey(0)
    N, C, H, W = 2, 4, 16, 16
    x = jax.random.normal(key, (N, C, H, W), dtype=jnp.float32)

    # Default Flatten(start_dim=1, end_dim=-1).
    out = jax.block_until_ready(pallas_flatten(x))
    assert out.shape == (N, C * H * W), out.shape
    assert out.dtype == x.dtype
    assert bool(jnp.array_equal(out, x.reshape(N, C * H * W)))

    # Partial flatten (start_dim=1, end_dim=2) keeps the trailing W axis.
    out2 = jax.block_until_ready(pallas_flatten(x, start_dim=1, end_dim=2))
    assert out2.shape == (N, C * H, W), out2.shape
    assert bool(jnp.array_equal(out2, x.reshape(N, C * H, W)))

    # Odd shape (total not a multiple of 128) exercises the fallback path.
    y = jax.random.normal(jax.random.PRNGKey(0), (3, 5, 7), dtype=jnp.float32)
    out3 = jax.block_until_ready(pallas_flatten(y))
    assert out3.shape == (3, 35), out3.shape
    assert bool(jnp.array_equal(out3, y.reshape(3, 35)))

    print("KERNEL_OK")
</pallas_src>

<mosaic_0001>
module attributes {stable_mosaic.version = 11 : i64} {
  func.func @_copy_kernel(%arg0: i32, %arg1: i32, %arg2: memref<8x256xf32, #tpu.memory_space<vmem>>, %arg3: memref<8x256xf32, #tpu.memory_space<vmem>>) attributes {dimension_semantics = [#tpu.dimension_semantics<parallel>, #tpu.dimension_semantics<parallel>], iteration_bounds = array<i64: 1, 1>, scalar_prefetch = 0 : i64, scratch_operands = 0 : i64, tpu.core_type = #tpu.core_type<tc>, window_params = [{transform_indices = @transform_0, window_bounds = array<i64: 8, 256>}, {transform_indices = @transform_1, window_bounds = array<i64: 8, 256>}]} {
    %c0 = arith.constant 0 : index
    %c0_0 = arith.constant 0 : index
    %0 = vector.load %arg2[%c0, %c0_0] : memref<8x256xf32, #tpu.memory_space<vmem>>, vector<8x256xf32>
    %c0_1 = arith.constant 0 : index
    %c0_2 = arith.constant 0 : index
    %1 = vector.load %arg3[%c0_1, %c0_2] : memref<8x256xf32, #tpu.memory_space<vmem>>, vector<8x256xf32>
    tpu.vector_store %arg3[%c0_1, %c0_2], %0 {strides = array<i32>} : memref<8x256xf32, #tpu.memory_space<vmem>>, vector<8x256xf32>,
    return
  }
  func.func @transform_0(%arg0: i32, %arg1: i32) -> (i32, i32) {
    %c0_i32 = arith.constant 0 : i32
    return %arg0, %arg1 : i32, i32
  }
  func.func @transform_1(%arg0: i32, %arg1: i32) -> (i32, i32) {
    %c0_i32 = arith.constant 0 : i32
    return %arg0, %arg1 : i32, i32
  }
}

</mosaic_0001>

<llo_original>
// kernel: tpu_custom_call.1
$region0: #{tpu_custom_call.1}
  #allocation0 [shape = 'u32[]', space=smem, size = 0x4, offset = 0x4, fixed_abs, tag = 'smem constant byte address 0x4 - core index']
  #allocation1 [shape = 'u32[144,128]{1,0:T(1,128)}', space=vmem, size = 0x12000, scoped, tag = 'internal scratch']
  %s0 = inlined_call_operand.hbm [shape: f32[8,256], index: 0, kind: input, shape index: {}, may-alias: {0,1}]
  %s1 = inlined_call_operand.hbm [shape: f32[8,256], index: 1, kind: output, shape index: {}, may-alias: {0,1}]
  %s2 = sld [smem:[#allocation0]]
  $region18: #{tpu_custom_call.1} parent=0
    _
  %s4 = ssub.s32 1, %s2
  %s5 = scalar_select 0, %s4, %s2
  $region1: #{tpu_custom_call.1} parent=0
    #allocation2 [shape = 'u8[8192]{0}', space=vmem, size = 0x2000, scoped, tag = 'input window, operand 0, single buffered']
    #allocation3 [shape = 's32[1]{0}', space=sflag, size = 0x4, scoped, tag = 'scoped memory for tpu_custom_call.1']
    #allocation4 [shape = 's32[1]{0}', space=sflag, size = 0x4, scoped, tag = 'scoped memory for tpu_custom_call.1']
    #allocation5 [shape = 'u8[8192]{0}', space=vmem, size = 0x2000, scoped, tag = 'output window, operand 0, single buffered']
    %6 = vsyncpa [#allocation3], 0
    %7 = vsyncpa [#allocation4], 0
    // Predicated region
    $region2: #{tpu_custom_call.1} parent=1 // pred_check
      _
    $region3: #{tpu_custom_call.1} parent=1 // pred_check_branch
      %9 = sbr.rel (0) target = $region5
    $region4: #{tpu_custom_call.1} parent=1 // pred_region
      %s11 = ssub.s32 256, 256
      %12 = vsyncadd [#allocation3], %s11
      %s14 = sshll.u32 [#allocation2], 4
      %s15 = int_to_ptr.vmem [resolvable:$true] %s14
      %17 = dma.hbm_to_vmem [thread:$0]  %s0, 256, %s15, [#allocation3]
    $region5: #{tpu_custom_call.1} parent=1 // pred_fallthru
      _
    // Predicated region
    $region6: #{tpu_custom_call.1} parent=1 // pred_check
      _
    $region7: #{tpu_custom_call.1} parent=1 // pred_check_branch
      %19 = sbr.rel (0) target = $region9
    $region8: #{tpu_custom_call.1} parent=1 // pred_region
      %20 = dma.done [#allocation3], 256
    $region9: #{tpu_custom_call.1} parent=1 // pred_fallthru
      _
    %v21 = vld [vmem:[#allocation2] sm:$0xff]
    %v22 = vld [vmem:[#allocation2 + $0x8] sm:$0xff]
    %23 = vst [vmem:[#allocation5] sm:$0xff] %v21
    %24 = vst [vmem:[#allocation5 + $0x8] sm:$0xff] %v22
    // Predicated region
    $region10: #{tpu_custom_call.1} parent=1 // pred_check
      _
    $region11: #{tpu_custom_call.1} parent=1 // pred_check_branch
      %26 = sbr.rel (0) target = $region13
    $region12: #{tpu_custom_call.1} parent=1 // pred_region
      %s28 = ssub.s32 256, 256
      %29 = vsyncadd [#allocation4], %s28
      %s31 = sshll.u32 [#allocation5], 4
      %s32 = int_to_ptr.vmem [resolvable:$true] %s31
      %34 = dma.vmem_to_hbm [thread:$0]  %s32, 256, %s1, [#allocation4]
    $region13: #{tpu_custom_call.1} parent=1 // pred_fallthru
      _
    // Predicated region
    $region14: #{tpu_custom_call.1} parent=1 // pred_check
      _
    $region15: #{tpu_custom_call.1} parent=1 // pred_check_branch
      %36 = sbr.rel (0) target = $region17
    $region16: #{tpu_custom_call.1} parent=1 // pred_region
      %37 = dma.done [#allocation4], 256
    $region17: #{tpu_custom_call.1} parent=1 // pred_fallthru
      _
    %38 = vsyncpa [#allocation3], 1
    %39 = vsyncpa [#allocation4], 1

</llo_original>
